<compile_context>
chip_gen: v7x
topology: tpu7x:2x2x1
jax: 0.10.0
libtpu: 0.0.40
codegen_flags: <defaults>
</compile_context>

<pallas_src>
import jax
import jax.numpy as jnp
from jax.experimental import pallas as pl
from jax.experimental.pallas import tpu as pltpu

_F32 = 4  # bytes


def _round_up(a, m):
    return ((a + m - 1) // m) * m


def _cdiv(a, b):
    return (a + b - 1) // b


def _vmem_capacity_bytes():
    """Per-core VMEM capacity; conservative (v7x) fallback if query fails."""
    try:
        info = pltpu.get_tpu_info()
        cap = getattr(info, "vmem_capacity_bytes", None)
        if cap:
            return int(cap)
    except Exception:
        pass
    return 64 * 1024 * 1024


# --------------------------------------------------------------------------
# Kernels
# --------------------------------------------------------------------------
def _softmax_rows_f32(y):
    """Row-wise softmax in f32.  The module's global (max+min)/2 shift cancels
    exactly against the per-row max subtraction and is intentionally omitted."""
    z = y - jnp.max(y, axis=1, keepdims=True)
    e = jnp.exp(z)
    s = jnp.sum(e, axis=1, keepdims=True)
    r = pl.reciprocal(s, approx=True)   # EUP vrcp (frees VALU)
    r = r * (2.0 - s * r)               # one Newton step -> ~f32 accuracy
    return e * r


def _rematcher_kernel_resident(x_ref, wt_ref, b_ref, o_ref):
    # wt_ref already holds W.T (pre-transposed once at param-prepare time),
    # so the contraction is x[TB, N] @ wt[N, N]; MXU runs in the operands'
    # native dtype with f32 accumulation.
    y = jnp.dot(x_ref[...], wt_ref[...], preferred_element_type=jnp.float32)
    y = y + b_ref[...]                                   # (1, N) f32 bias
    o_ref[...] = _softmax_rows_f32(y).astype(o_ref.dtype)


def _rematcher_kernel_coltiled(x_ref, wt_ref, b_ref, o_ref, y_sc):
    # Fallback for weights that do not fit VMEM: grid = (batch tiles, N tiles).
    # Each column tile writes its slice of the pre-softmax logits into a
    # resident (TB, N) f32 scratch; the last column tile runs the softmax and
    # writes the output block (constant output index over j -> resident).
    j = pl.program_id(1)
    nj = pl.num_programs(1)
    tn = wt_ref.shape[1]

    y = jnp.dot(x_ref[...], wt_ref[...], preferred_element_type=jnp.float32)
    y = y + b_ref[...]
    col0 = pl.multiple_of(j * tn, tn)
    y_sc[:, pl.ds(col0, tn)] = y

    @pl.when(j == nj - 1)
    def _():
        o_ref[...] = _softmax_rows_f32(y_sc[...]).astype(o_ref.dtype)


# --------------------------------------------------------------------------
# Planning (tile sizes, layout, VMEM budget)
# --------------------------------------------------------------------------
def _make_plan(B, n, x_dtype, w_dtype, *, tb=512, force_coltiled=False,
               coltiled_tn=None, vmem_budget=None):
    itemsize = jnp.dtype(x_dtype).itemsize
    w_itemsize = jnp.dtype(w_dtype).itemsize
    capacity = _vmem_capacity_bytes()
    budget = vmem_budget if vmem_budget is not None else (capacity * 3) // 4

    # Lane layout of the category axis: pad to a multiple of 128 only when the
    # overhead is small; otherwise run unpadded (block == full array dim is
    # legal and saves HBM traffic in a memory-bound kernel).
    n128 = _round_up(n, 128)
    N = n128 if n128 <= n * 1.25 else n

    # Cap TB at ceil(B/2) so the "parallel" batch axis has >= 2 grid steps
    # (otherwise one v7x TensorCore idles).  Harmless on single-TC v5e/v6e.
    two_step_cap = max(8, _round_up(_cdiv(B, 2), 8))

    if not force_coltiled:
        # Resident-weight path footprint (conservative: double-buffered weight,
        # double-buffered x/out tiles, 3x f32 intermediates per row).
        w_bytes = 2 * N * N * w_itemsize + N * _F32
        per_row = 4 * N * itemsize + 3 * N * _F32
        max_tb = ((budget - w_bytes) // per_row) // 8 * 8 if budget > w_bytes else 0
        if max_tb >= 8:
            TB = max(8, min(tb, two_step_cap, max_tb))
            Bp = _round_up(B, TB)
            footprint = w_bytes + per_row * TB
            vmem_limit = int(min(capacity, max(2 * footprint, 32 * 1024 * 1024)))
            return dict(mode="resident", N=N, TB=TB, Bp=Bp, TN=None,
                        vmem_limit=vmem_limit)

    # Column-tiled fallback (weight does not fit VMEM, or forced for testing).
    # Prefer large TB first (the weight is re-streamed once per batch tile),
    # then the largest column tile TN that fits.
    tn_candidates = (coltiled_tn,) if coltiled_tn else (512, 256, 128)
    for tb_try in (256, 128, 64, 32, 16, 8):
        TB = max(8, min(tb_try, two_step_cap))
        for TN in tn_candidates:
            Np = _round_up(n, TN)
            footprint = (2 * Np * TN * w_itemsize      # weight column tiles (x2 bufs)
                         + 2 * TB * Np * itemsize      # x tile, resident over j
                         + 2 * TB * Np * itemsize      # out tile
                         + TB * Np * _F32              # y scratch
                         + 2 * TB * Np * _F32          # softmax f32 temporaries
                         + 2 * TB * TN * _F32)         # per-column-tile temps
            last_resort = (tb_try == 8 and TN == tn_candidates[-1])
            if footprint <= budget or last_resort:
                Bp = _round_up(B, TB)
                vmem_limit = int(min(capacity, max(2 * footprint, 32 * 1024 * 1024)))
                return dict(mode="coltiled", N=Np, TB=TB, Bp=Bp, TN=TN,
                            vmem_limit=vmem_limit)
    raise AssertionError("unreachable")


# --------------------------------------------------------------------------
# Parameter preparation (hoisted: do once at parameter-load time)
# --------------------------------------------------------------------------
def prepare_rematcher_params(weight, bias, plan):
    """Pre-transpose (+ pad) the weight and pad the bias once.  Padded
    categories get a huge negative bias so they collapse to ~0 probability."""
    n = weight.shape[0]
    N = plan["N"]
    w_t = weight.T
    if N != n:
        w_t = jnp.zeros((N, N), weight.dtype).at[:n, :n].set(w_t)
        b_p = jnp.full((1, N), -1e30, jnp.float32).at[0, :n].set(
            bias.astype(jnp.float32))
    else:
        b_p = bias.astype(jnp.float32).reshape(1, n)
    return w_t, b_p


# --------------------------------------------------------------------------
# Forward
# --------------------------------------------------------------------------
def rematcher_forward_prepared(x, w_t, b_p, plan):
    B, n = x.shape
    N, TB, Bp = plan["N"], plan["TB"], plan["Bp"]
    dtype = x.dtype

    needs_pad = (Bp, N) != (B, n)
    if needs_pad:
        x_in = jnp.zeros((Bp, N), dtype).at[:B, :n].set(x)
    else:
        x_in = x  # aligned shapes: no extra HBM round trip

    if plan["mode"] == "resident":
        out = pl.pallas_call(
            _rematcher_kernel_resident,
            out_shape=jax.ShapeDtypeStruct((Bp, N), dtype),
            grid=(Bp // TB,),
            in_specs=[
                pl.BlockSpec((TB, N), lambda i: (i, 0)),   # x tile, pipelined
                pl.BlockSpec((N, N), lambda i: (0, 0)),    # W.T, resident
                pl.BlockSpec((1, N), lambda i: (0, 0)),    # bias, resident
            ],
            out_specs=pl.BlockSpec((TB, N), lambda i: (i, 0)),
            compiler_params=pltpu.CompilerParams(
                dimension_semantics=("parallel",),          # megacore on v7x
                vmem_limit_bytes=plan["vmem_limit"]),
        )(x_in, w_t, b_p)
    else:
        TN = plan["TN"]
        out = pl.pallas_call(
            _rematcher_kernel_coltiled,
            out_shape=jax.ShapeDtypeStruct((Bp, N), dtype),
            grid=(Bp // TB, N // TN),
            in_specs=[
                pl.BlockSpec((TB, N), lambda i, j: (i, 0)),  # x, resident over j
                pl.BlockSpec((N, TN), lambda i, j: (0, j)),  # weight column tile
                pl.BlockSpec((1, TN), lambda i, j: (0, j)),  # bias column tile
            ],
            out_specs=pl.BlockSpec((TB, N), lambda i, j: (i, 0)),
            scratch_shapes=[pltpu.VMEM((TB, N), jnp.float32)],
            compiler_params=pltpu.CompilerParams(
                dimension_semantics=("parallel", "arbitrary"),
                vmem_limit_bytes=plan["vmem_limit"]),
        )(x_in, w_t, b_p)

    if needs_pad:
        out = out[:B, :n]
    return out


def rematcher_forward(x, weight, bias, *, tb=512, force_coltiled=False,
                      coltiled_tn=None, vmem_budget=None):
    """Convenience wrapper: plan + prepare params + run.  For repeated calls,
    hoist _make_plan / prepare_rematcher_params out and call
    rematcher_forward_prepared directly (params are prepared once)."""
    B, n = x.shape
    plan = _make_plan(B, n, x.dtype, weight.dtype, tb=tb,
                      force_coltiled=force_coltiled, coltiled_tn=coltiled_tn,
                      vmem_budget=vmem_budget)
    w_t, b_p = prepare_rematcher_params(weight, bias, plan)
    return rematcher_forward_prepared(x, w_t, b_p, plan)


def rematcher_reference(x, weight, bias):
    """Pure-XLA reference with the original (redundant) global shift."""
    y = x @ weight.T + bias[None, :]
    shift = (jnp.max(y) + jnp.min(y)) * 0.5
    return jax.nn.softmax(y - shift, axis=1)


# --------------------------------------------------------------------------
# Tests
# --------------------------------------------------------------------------
if __name__ == "__main__":
    key = jax.random.PRNGKey(0)
    keys = jax.random.split(key, 12)

    def make_inputs(kx, kw, B, n, identity):
        logits = jax.random.normal(kx, (B, n), dtype=jnp.float32)
        x = jax.nn.log_softmax(logits, axis=1)
        if identity:
            w = jnp.eye(n, dtype=jnp.float32)
            b = jnp.zeros((n,), jnp.float32)
        else:
            kw1, kw2 = jax.random.split(kw)
            w = jnp.eye(n, dtype=jnp.float32) + 0.05 * jax.random.normal(
                kw1, (n, n), dtype=jnp.float32)
            b = 0.1 * jax.random.normal(kw2, (n,), dtype=jnp.float32)
        return x, w, b

    def check(out, x, w, b):
        ref = rematcher_reference(x, w, b)
        assert out.shape == x.shape
        assert jnp.allclose(out, ref, atol=1e-5, rtol=1e-5), "mismatch vs reference"
        assert jnp.allclose(jnp.sum(out, axis=1), 1.0, atol=1e-4), "rows not normalized"

    # 1. Module-default toy shape: 8 examples, 4 categories, identity init
    #    (weight = I, bias = 0, exactly __init__/restore_best). Unpadded lanes.
    x1, w1, b1 = make_inputs(keys[0], keys[1], 8, 4, identity=True)
    out1 = jax.block_until_ready(rematcher_forward(x1, w1, b1))
    check(out1, x1, w1, b1)

    # 2. Non-identity params, batch not a multiple of the tile (batch padding),
    #    unpadded 32-wide category axis, 2-step pipelined batch grid.
    x2, w2, b2 = make_inputs(keys[2], keys[3], 260, 32, identity=False)
    out2 = jax.block_until_ready(rematcher_forward(x2, w2, b2))
    check(out2, x2, w2, b2)

    # 3. Fully aligned shapes (B % TB == 0, n % 128 == 0): no wrapper-side
    #    pad/slice copies at all; params prepared once and forward jitted.
    x3, w3, b3 = make_inputs(keys[4], keys[5], 512, 128, identity=False)
    plan3 = _make_plan(512, 128, x3.dtype, w3.dtype)
    w_t3, b_p3 = prepare_rematcher_params(w3, b3, plan3)
    fwd3 = jax.jit(lambda xx: rematcher_forward_prepared(xx, w_t3, b_p3, plan3))
    out3 = jax.block_until_ready(fwd3(x3))
    check(out3, x3, w3, b3)

    # 4. Category axis close to a 128 multiple: padded lanes, fake categories
    #    suppressed by the -1e30 bias.
    x4, w4, b4 = make_inputs(keys[6], keys[7], 48, 120, identity=False)
    out4 = jax.block_until_ready(rematcher_forward(x4, w4, b4))
    check(out4, x4, w4, b4)

    # 5. Column-tiled fallback (forced, small column tile so the softmax runs
    #    across 2 weight column tiles through the resident f32 scratch).
    x5, w5, b5 = make_inputs(keys[8], keys[9], 64, 200, identity=False)
    out5 = jax.block_until_ready(
        rematcher_forward(x5, w5, b5, force_coltiled=True, coltiled_tn=128))
    check(out5, x5, w5, b5)

    print("KERNEL_OK")
</pallas_src>

<mosaic_0001>
module attributes {stable_mosaic.version = 11 : i64} {
  func.func @_rematcher_kernel_resident(%arg0: i32, %arg1: memref<8x4xf32, #tpu.memory_space<vmem>>, %arg2: memref<4x4xf32, #tpu.memory_space<vmem>>, %arg3: memref<1x4xf32, #tpu.memory_space<vmem>>, %arg4: memref<8x4xf32, #tpu.memory_space<vmem>>) attributes {dimension_semantics = [#tpu.dimension_semantics<parallel>], iteration_bounds = array<i64: 1>, scalar_prefetch = 0 : i64, scratch_operands = 0 : i64, tpu.core_type = #tpu.core_type<tc>, window_params = [{transform_indices = @transform_0, window_bounds = array<i64: 8, 4>}, {pipeline_mode = #tpu.pipeline_mode<synchronous>, transform_indices = @transform_1, window_bounds = array<i64: 4, 4>}, {pipeline_mode = #tpu.pipeline_mode<synchronous>, transform_indices = @transform_2, window_bounds = array<i64: 1, 4>}, {transform_indices = @transform_3, window_bounds = array<i64: 8, 4>}]} {
    %c0 = arith.constant 0 : index
    %c0_0 = arith.constant 0 : index
    %0 = vector.load %arg1[%c0, %c0_0] : memref<8x4xf32, #tpu.memory_space<vmem>>, vector<8x4xf32>
    %c0_1 = arith.constant 0 : index
    %c0_2 = arith.constant 0 : index
    %1 = vector.load %arg2[%c0_1, %c0_2] : memref<4x4xf32, #tpu.memory_space<vmem>>, vector<4x4xf32>
    %cst = arith.constant dense<0.000000e+00> : vector<8x4xf32>
    %2 = tpu.matmul %0, %1, %cst {dimension_numbers = #tpu.dot_dimension_numbers<[1], [0], [0], [1], [0, 0, 1, 1], [], []>} : vector<8x4xf32>, vector<4x4xf32>, vector<8x4xf32> -> vector<8x4xf32>
    %c0_3 = arith.constant 0 : index
    %c0_4 = arith.constant 0 : index
    %3 = vector.load %arg3[%c0_3, %c0_4] : memref<1x4xf32, #tpu.memory_space<vmem>>, vector<1x4xf32>
    %4 = vector.broadcast %3 : vector<1x4xf32> to vector<8x4xf32>
    %5 = arith.addf %2, %4 : vector<8x4xf32>
    %cst_5 = arith.constant dense<0xFF800000> : vector<8xf32>
    %6 = vector.multi_reduction <maximumf>, %5, %cst_5 [1] : vector<8x4xf32> to vector<8xf32>
    %7 = vector.shape_cast %6 : vector<8xf32> to vector<8x1xf32>
    %8 = vector.broadcast %7 : vector<8x1xf32> to vector<8x4xf32>
    %9 = arith.subf %5, %8 : vector<8x4xf32>
    %10 = math.exp %9 : vector<8x4xf32>
    %cst_6 = arith.constant dense<0.000000e+00> : vector<8xf32>
    %11 = vector.multi_reduction <add>, %10, %cst_6 [1] : vector<8x4xf32> to vector<8xf32>
    %12 = vector.shape_cast %11 : vector<8xf32> to vector<8x1xf32>
    %13 = tpu.reciprocal %12 {approx = true} : vector<8x1xf32> -> vector<8x1xf32>
    %14 = arith.mulf %12, %13 : vector<8x1xf32>
    %cst_7 = arith.constant 2.000000e+00 : f32
    %15 = vector.broadcast %cst_7 : f32 to vector<8x1xf32>
    %16 = arith.subf %15, %14 : vector<8x1xf32>
    %17 = arith.mulf %13, %16 : vector<8x1xf32>
    %18 = vector.broadcast %17 : vector<8x1xf32> to vector<8x4xf32>
    %19 = arith.mulf %10, %18 : vector<8x4xf32>
    %c0_8 = arith.constant 0 : index
    %c0_9 = arith.constant 0 : index
    %20 = vector.load %arg4[%c0_8, %c0_9] : memref<8x4xf32, #tpu.memory_space<vmem>>, vector<8x4xf32>
    tpu.vector_store %arg4[%c0_8, %c0_9], %19 {strides = array<i32>} : memref<8x4xf32, #tpu.memory_space<vmem>>, vector<8x4xf32>,
    return
  }
  func.func @transform_0(%arg0: i32) -> (i32, i32) {
    %c0_i32 = arith.constant 0 : i32
    %c0_i32_0 = arith.constant 0 : i32
    return %arg0, %c0_i32 : i32, i32
  }
  func.func @transform_1(%arg0: i32) -> (i32, i32) {
    %c0_i32 = arith.constant 0 : i32
    %c0_i32_0 = arith.constant 0 : i32
    %c0_i32_1 = arith.constant 0 : i32
    return %c0_i32, %c0_i32_0 : i32, i32
  }
  func.func @transform_2(%arg0: i32) -> (i32, i32) {
    %c0_i32 = arith.constant 0 : i32
    %c0_i32_0 = arith.constant 0 : i32
    %c0_i32_1 = arith.constant 0 : i32
    return %c0_i32, %c0_i32_0 : i32, i32
  }
  func.func @transform_3(%arg0: i32) -> (i32, i32) {
    %c0_i32 = arith.constant 0 : i32
    %c0_i32_0 = arith.constant 0 : i32
    return %arg0, %c0_i32 : i32, i32
  }
}

</mosaic_0001>

<llo_original>
// kernel: tpu_custom_call.1
$region0: #{tpu_custom_call.1}
  #allocation0 [shape = 'u32[]', space=smem, size = 0x4, offset = 0x4, fixed_abs, tag = 'smem constant byte address 0x4 - core index']
  #allocation1 [shape = 'u32[144,128]{1,0:T(1,128)}', space=vmem, size = 0x12000, scoped, tag = 'internal scratch']
  %s0 = inlined_call_operand.vmem [shape: f32[8,4], index: 0, kind: input, shape index: {}]
  %s1 = inlined_call_operand.vmem [shape: f32[4,4], index: 1, kind: input, shape index: {}]
  %s2 = inlined_call_operand.vmem [shape: f32[1,4], index: 2, kind: input, shape index: {}]
  %s3 = inlined_call_operand.vmem [shape: f32[8,4], index: 3, kind: output, shape index: {}]
  %s4 = sld [smem:[#allocation0]]
  $region22: #{tpu_custom_call.1} parent=0
    _
  %s6 = ssub.s32 1, %s4
  %s7 = scalar_select 0, %s6, %s4
  // Predicated region
  $region2: #{tpu_custom_call.1} parent=0 // pred_check
    _
  $region3: #{tpu_custom_call.1} parent=0 // pred_check_branch
    %9 = sbr.rel (0) target = $region5
  $region4: #{tpu_custom_call.1} parent=0 // pred_region
    _
  $region5: #{tpu_custom_call.1} parent=0 // pred_fallthru
    _
  // Predicated region
  $region6: #{tpu_custom_call.1} parent=0 // pred_check
    _
  $region7: #{tpu_custom_call.1} parent=0 // pred_check_branch
    %11 = sbr.rel (0) target = $region9
  $region8: #{tpu_custom_call.1} parent=0 // pred_region
    _
  $region9: #{tpu_custom_call.1} parent=0 // pred_fallthru
    _
  // Predicated region
  $region10: #{tpu_custom_call.1} parent=0 // pred_check
    _
  $region11: #{tpu_custom_call.1} parent=0 // pred_check_branch
    %13 = sbr.rel (0) target = $region13
  $region12: #{tpu_custom_call.1} parent=0 // pred_region
    _
  $region13: #{tpu_custom_call.1} parent=0 // pred_fallthru
    _
  %v14 = vld [vmem:[%s0] sm:$0xff]
  %v15 = vld [vmem:[%s1] sm:$0xf]
  %v16 = vld [vmem:[%s2] sm:$0x1]
  %v18 = vlaneseq
  %v19 = vshrl.u32 %v18, 7
  %v20 = vsub.s32 0, %v19
  %v21 = vrot.slane %v16, %v20
  %vm23 = vcmask 31744
  %v25 = vsel %vm23, %v14, 0
  %vm27 = vcmask 1043456
  %v29 = vsel %vm27, %v15, 0
  %31 = vmatprep.subr.mxu0 0.0
  %32 = vmatpush1.msra.mxu0 %v29
  %33 = vmatprep.subr.mxu0 0.0
  %34 = vmatpush1.msra.mxu0 0.0
  %35 = vmatprep.subr.mxu0 0.0
  %36 = vmatpush1.msra.mxu0 0.0
  %37 = vmatprep.subr.mxu0 0.0
  %38 = vmatpush1.msra.mxu0 0.0
  %39 = vmatprep.subr.mxu0 0.0
  %40 = vmatpush1.msra.mxu0 0.0
  %41 = vmatprep.subr.mxu0 0.0
  %42 = vmatpush1.msra.mxu0 0.0
  %43 = vmatprep.subr.mxu0 0.0
  %44 = vmatpush1.msra.mxu0 0.0
  %45 = vmatprep.subr.mxu0 0.0
  %46 = vmatpush1.msra.mxu0 0.0
  %47 = vmatprep.subr.mxu0 0.0
  %48 = vmatpush1.msra.mxu0 0.0
  %49 = vmatprep.subr.mxu0 0.0
  %50 = vmatpush1.msra.mxu0 0.0
  %51 = vmatprep.subr.mxu0 0.0
  %52 = vmatpush1.msra.mxu0 0.0
  %53 = vmatprep.subr.mxu0 0.0
  %54 = vmatpush1.msra.mxu0 0.0
  %55 = vmatprep.subr.mxu0 0.0
  %56 = vmatpush1.msra.mxu0 0.0
  %57 = vmatprep.subr.mxu0 0.0
  %58 = vmatpush1.msra.mxu0 0.0
  %59 = vmatprep.subr.mxu0 0.0
  %60 = vmatpush1.msra.mxu0 0.0
  %61 = vmatprep.subr.mxu0 0.0
  %62 = vmatpush1.msra.mxu0 0.0
  %63 = vmatprep.subr.mxu0 0.0
  %64 = vmatpush1.msra.mxu0 0.0
  %65 = vmatprep.subr.mxu0 0.0
  %66 = vmatpush1.msra.mxu0 0.0
  %67 = vmatprep.subr.mxu0 0.0
  %68 = vmatpush1.msra.mxu0 0.0
  %69 = vmatprep.subr.mxu0 0.0
  %70 = vmatpush1.msra.mxu0 0.0
  %71 = vmatprep.subr.mxu0 0.0
  %72 = vmatpush1.msra.mxu0 0.0
  %73 = vmatprep.subr.mxu0 0.0
  %74 = vmatpush1.msra.mxu0 0.0
  %75 = vmatprep.subr.mxu0 0.0
  %76 = vmatpush1.msra.mxu0 0.0
  %77 = vmatprep.subr.mxu0 0.0
  %78 = vmatpush1.msra.mxu0 0.0
  %79 = vmatprep.subr.mxu0 0.0
  %80 = vmatpush1.msra.mxu0 0.0
  %81 = vmatprep.subr.mxu0 0.0
  %82 = vmatpush1.msra.mxu0 0.0
  %83 = vmatprep.subr.mxu0 0.0
  %84 = vmatpush1.msra.mxu0 0.0
  %85 = vmatprep.subr.mxu0 0.0
  %86 = vmatpush1.msra.mxu0 0.0
  %87 = vmatprep.subr.mxu0 0.0
  %88 = vmatpush1.msra.mxu0 0.0
  %89 = vmatprep.subr.mxu0 0.0
  %90 = vmatpush1.msra.mxu0 0.0
  %91 = vmatprep.subr.mxu0 0.0
  %92 = vmatpush1.msra.mxu0 0.0
  %93 = vmatprep.subr.mxu0 0.0
  %94 = vmatpush1.msra.mxu0 0.0
  %95 = vmatprep.mubr.f32.mxu0 0.0
  %96 = vmatmul.mubr.f32.gmra.mrb[0].mxu0 %v25
  %v97 = vpop.f32.mrb[0].mxu0
  %v98 = vadd.f32 %v21, %v97
  %v99 = vpop.f32.mrb[0].mxu0
  %100 = vdwg.mxu0
  %v101 = vsel %vm23, %v98, -inf
  %102 = vmax.xlane.f32.xlu0 %v101
  %v103 = vpop.xlane.xlu0 %102
  %v104 = vsub.f32 %v98, %v103
  %v105 = vmul.f32 %v104, 1.442695
  %v106 = vpow.pop %v105
  %v107 = vsel %vm23, %v106, 0.0
  %108 = vadd.xlane.f32.xlu0 %v107
  %v109 = vpop.xlane.xlu0 %108
  %v110 = vrcp.pop %v109
  %v111 = vmul.f32 %v109, %v110
  %v112 = vsub.f32 2.0, %v111
  %v113 = vmul.f32 %v110, %v112
  %v114 = vmul.f32 %v106, %v113
  %115 = vst.msk [vmem:[%s3] sm:$0xff] %vm23, %v114
  // Predicated region
  $region14: #{tpu_custom_call.1} parent=0 // pred_check
    _
  $region15: #{tpu_custom_call.1} parent=0 // pred_check_branch
    %117 = sbr.rel (0) target = $region17
  $region16: #{tpu_custom_call.1} parent=0 // pred_region
    _
  $region17: #{tpu_custom_call.1} parent=0 // pred_fallthru
    _
  // Predicated region
  $region18: #{tpu_custom_call.1} parent=0 // pred_check
    _
  $region19: #{tpu_custom_call.1} parent=0 // pred_check_branch
    %119 = sbr.rel (0) target = $region21
  $region20: #{tpu_custom_call.1} parent=0 // pred_region
    _
  $region21: #{tpu_custom_call.1} parent=0 // pred_fallthru
    _

</llo_original>
